<compile_context>
chip_gen: v7x
topology: tpu7x:2x2x1
jax: 0.10.0
libtpu: 0.0.40
codegen_flags: <defaults>
</compile_context>

<pallas_src>
import functools

import jax
import jax.numpy as jnp
import numpy as np
from jax.experimental import pallas as pl
from jax.experimental.pallas import tpu as pltpu

_LANES = 128
# ps, pa, ts, ta, ps^2, pa^2, ts^2, ta^2, ps*pa, ps*ts, pa*ta
_N_STATS = 11
_NUM_CORES = 2  # leading "parallel" axis; 2-TC split on v7x, sequential elsewhere


def _fold8(x):
    """Reduce (BR, 128) -> (8, 128) by tile-aligned halving adds (BR = 8*2^k)."""
    r = x
    while r.shape[0] > 8:
        h = r.shape[0] // 2
        r = r[:h, :] + r[h:, :]
    return r


def _stats_kernel(ps_ref, pa_ref, ts_ref, ta_ref, out_ref, acc_ref,
                  *, valid_rows, br, cpc, emit_mask_path):
    """Accumulates 11 raw-moment sufficient statistics for one TensorCore."""
    c = pl.program_id(0)   # core-split axis ("parallel")
    i = pl.program_id(1)   # streaming axis ("arbitrary")

    @pl.when(i == 0)
    def _init():
        acc_ref[...] = jnp.zeros(acc_ref.shape, acc_ref.dtype)

    # Inputs streamed in native dtype; cast to f32 per chunk in VMEM.
    ps = ps_ref[...].astype(jnp.float32)   # (BR, 128) pred_steering
    pa = pa_ref[...].astype(jnp.float32)   # (BR, 128) pred_accel
    ts = ts_ref[...].astype(jnp.float32)   # (BR, 128) target_steering
    ta = ta_ref[...].astype(jnp.float32)   # (BR, 128) target_accel

    def accumulate(a, b, t, u):
        # compute -> fold -> accumulate one statistic at a time so only ~one
        # full-size (BR, 128) product is live (low vreg/VMEM pressure).
        acc_ref[0] += _fold8(a)
        acc_ref[1] += _fold8(b)
        acc_ref[2] += _fold8(t)
        acc_ref[3] += _fold8(u)
        acc_ref[4] += _fold8(a * a)
        acc_ref[5] += _fold8(b * b)
        acc_ref[6] += _fold8(t * t)
        acc_ref[7] += _fold8(u * u)
        acc_ref[8] += _fold8(a * b)
        acc_ref[9] += _fold8(a * t)
        acc_ref[10] += _fold8(b * u)

    if emit_mask_path:
        # Intended (unclamped) start row of this block; blocks that spill past
        # the valid rows (ragged tail / fully out-of-range clamped blocks) take
        # the masked cold path, everything else the unmasked fast path.
        start_row = (c * cpc + i) * br
        in_bounds = start_row + br <= valid_rows

        @pl.when(in_bounds)
        def _fast():
            accumulate(ps, pa, ts, ta)

        @pl.when(jnp.logical_not(in_bounds))
        def _ragged():
            row_ids = jax.lax.broadcasted_iota(jnp.int32, (br, _LANES), 0)
            m = (row_ids + start_row) < valid_rows
            accumulate(jnp.where(m, ps, 0.0), jnp.where(m, pa, 0.0),
                       jnp.where(m, ts, 0.0), jnp.where(m, ta, 0.0))
    else:
        accumulate(ps, pa, ts, ta)

    @pl.when(i == cpc - 1)
    def _writeout():
        out_ref[0] = acc_ref[...]   # lane-dense (11, 8, 128) partial stats


def sequential_accel_steering_loss(pred_steering, pred_accel,
                                   target_steering, target_accel,
                                   corr_weight=1.0, indep_weight=1.0,
                                   pearson_weight=1.0, max_block_rows=2048):
    """JAX/Pallas equivalent of SequentialAccelerationSteeringLoss.forward."""
    if corr_weight < 0 or indep_weight < 0 or pearson_weight < 0:
        raise ValueError(
            f"Weights must be non-negative. Received: corr_weight={corr_weight},"
            f" indep_weight={indep_weight}, pearson_weight={pearson_weight}")

    flats = [jnp.reshape(x, (-1,)) for x in
             (pred_steering, pred_accel, target_steering, target_accel)]
    n = flats[0].shape[0]
    rows = max(1, -(-n // _LANES))

    def to2d(x):
        # No big pad: when n % 128 == 0 this reshape is layout-compatible.
        if n != rows * _LANES:
            # TODO(synk): a 1-D BlockSpec would avoid even this small tail pad.
            x = jnp.pad(x, (0, rows * _LANES - n))   # zeros contribute 0 to sums
        return jnp.reshape(x, (rows, _LANES))         # native dtype, no upcast

    ps2d, pa2d, ts2d, ta2d = (to2d(x) for x in flats)

    # Block rows = 8 * 2^k (fold tree valid by construction), capped.
    max_block_rows = max(8, int(max_block_rows))
    br = 8
    while br < rows and br * 2 <= max_block_rows:
        br *= 2

    row_blocks = -(-rows // br)
    cpc = -(-row_blocks // _NUM_CORES)          # chunks per TensorCore
    # Masking code is only emitted when some block can contain invalid rows.
    emit_mask_path = not (rows % br == 0 and row_blocks % _NUM_CORES == 0)

    kernel = functools.partial(_stats_kernel, valid_rows=rows, br=br, cpc=cpc,
                               emit_mask_path=emit_mask_path)

    def in_map(c, i):
        # Clamp so the (possibly empty) last block of core 1 stays in bounds;
        # the kernel fully masks its contribution.
        return (jnp.minimum(c * cpc + i, row_blocks - 1), 0)

    in_spec = pl.BlockSpec((br, _LANES), in_map)
    out_spec = pl.BlockSpec((1, _N_STATS, 8, _LANES), lambda c, i: (c, 0, 0, 0))

    partials = pl.pallas_call(
        kernel,
        out_shape=jax.ShapeDtypeStruct((_NUM_CORES, _N_STATS, 8, _LANES),
                                       jnp.float32),
        grid_spec=pltpu.PrefetchScalarGridSpec(
            num_scalar_prefetch=0,
            grid=(_NUM_CORES, cpc),
            in_specs=[in_spec, in_spec, in_spec, in_spec],
            out_specs=out_spec,
            scratch_shapes=[pltpu.VMEM((_N_STATS, 8, _LANES), jnp.float32)]),
        compiler_params=pltpu.CompilerParams(
            dimension_semantics=("parallel", "arbitrary"),
            vmem_limit_bytes=32 * 1024 * 1024),
    )(ps2d, pa2d, ts2d, ta2d)

    # ---- combine per-core partials + scalar epilogue (plain JAX, ~30 flops) --
    sums = jnp.sum(partials, axis=(0, 2, 3), dtype=jnp.float32)   # (11,)
    (s_ps, s_pa, s_ts, s_ta,
     s_ps2, s_pa2, s_ts2, s_ta2,
     s_pspa, s_psts, s_pata) = [sums[i] for i in range(_N_STATS)]

    n_f = float(n)
    inv_n = 1.0 / n_f
    inv_nm1 = 1.0 / (n_f - 1.0) if n > 1 else 0.0    # torch .std() is unbiased

    # ----- MSE losses, reconstructed from raw moments (13 -> 11 stats) --------
    steer_loss = jnp.maximum(s_ps2 - 2.0 * s_psts + s_ts2, 0.0) * inv_n
    accel_loss = jnp.maximum(s_pa2 - 2.0 * s_pata + s_ta2, 0.0) * inv_n

    # ----- centered second moments from raw moments ---------------------------
    m_ps, m_pa = s_ps * inv_n, s_pa * inv_n
    m_ts, m_ta = s_ts * inv_n, s_ta * inv_n
    css_ps = jnp.maximum(s_ps2 - n_f * m_ps * m_ps, 0.0)
    css_pa = jnp.maximum(s_pa2 - n_f * m_pa * m_pa, 0.0)
    css_ts = jnp.maximum(s_ts2 - n_f * m_ts * m_ts, 0.0)
    css_ta = jnp.maximum(s_ta2 - n_f * m_ta * m_ta, 0.0)
    csc_pspa = s_pspa - n_f * m_ps * m_pa
    csc_psts = s_psts - n_f * m_ps * m_ts
    csc_pata = s_pata - n_f * m_pa * m_ta

    # ----- correlation_loss(pred_steering, pred_accel) ------------------------
    a_std = jnp.sqrt(css_ps * inv_nm1)
    s_std = jnp.sqrt(css_pa * inv_nm1)
    corr = jnp.clip((csc_pspa * inv_n) / (a_std * s_std), -0.99, 0.99)
    corr_loss = jnp.where(jnp.isnan(corr) | jnp.isinf(corr), 0.0, 1.0 - corr)
    corr_loss = jnp.where((a_std < 1e-8) | (s_std < 1e-8), 0.0, corr_loss)

    # ----- independence_loss(pred_steering, pred_accel) -----------------------
    # NaN in any pred element propagates into its sum -> no extra NaN scan.
    # Gating is applied to the cross-core COMBINED sums (review correctness note).
    has_nan = jnp.isnan(s_ps) | jnp.isnan(s_pa)
    corr_val = csc_pspa / jnp.sqrt(css_ps * css_pa)       # ddof cancels in ratio
    indep_loss = jnp.where(jnp.isnan(corr_val) | jnp.isinf(corr_val),
                           0.0, jnp.abs(corr_val))
    indep_loss = jnp.where(has_nan | (a_std < 1e-8) | (s_std < 1e-8),
                           0.0, indep_loss)

    # ----- pearson_correlation_loss (population variances) --------------------
    def pearson(csc_pt, css_p, css_t):
        cov_pt, var_p, var_t = csc_pt * inv_n, css_p * inv_n, css_t * inv_n
        c = jnp.clip(cov_pt / (jnp.sqrt(var_p * var_t) + 1e-8), -0.99, 0.99)
        loss = jnp.where(jnp.isnan(c) | jnp.isinf(c), 0.0, 1.0 - jnp.abs(c))
        return jnp.where((var_p < 1e-8) | (var_t < 1e-8), 0.0, loss)

    steer_pearson = pearson(csc_psts, css_ps, css_ts)
    accel_pearson = pearson(csc_pata, css_pa, css_ta)

    total = (steer_loss + accel_loss
             + corr_weight * corr_loss
             + indep_weight * indep_loss
             + pearson_weight * (steer_pearson + accel_pearson))
    return total, steer_loss, accel_loss


def _reference(ps, pa, ts, ta, cw=1.0, iw=1.0, pw=1.0):
    """Pure-JAX port of the PyTorch module (two-pass math), for verification."""
    ps, pa, ts, ta = (jnp.reshape(x, (-1,)).astype(jnp.float32)
                      for x in (ps, pa, ts, ta))
    steer = jnp.mean((ps - ts) ** 2)
    accel = jnp.mean((pa - ta) ** 2)

    def corr_loss_fn(a, s):
        a_std, s_std = jnp.std(a, ddof=1), jnp.std(s, ddof=1)
        cov = jnp.mean((a - a.mean()) * (s - s.mean()))
        corr = jnp.clip(cov / (a_std * s_std), -0.99, 0.99)
        val = jnp.where(jnp.isnan(corr) | jnp.isinf(corr), 0.0, 1.0 - corr)
        return jnp.where((a_std < 1e-8) | (s_std < 1e-8), 0.0, val)

    def indep_loss_fn(a, s):
        a_c, s_c = a - a.mean(), s - s.mean()
        cv = jnp.sum(a_c * s_c) / jnp.sqrt(jnp.sum(a_c ** 2) * jnp.sum(s_c ** 2))
        val = jnp.where(jnp.isnan(cv) | jnp.isinf(cv), 0.0, jnp.abs(cv))
        has_nan = jnp.any(jnp.isnan(a)) | jnp.any(jnp.isnan(s))
        return jnp.where(has_nan | (jnp.std(a, ddof=1) < 1e-8)
                         | (jnp.std(s, ddof=1) < 1e-8), 0.0, val)

    def pearson_fn(p, t):
        pc, tc = p - p.mean(), t - t.mean()
        cov, vp, vt = jnp.mean(pc * tc), jnp.mean(pc ** 2), jnp.mean(tc ** 2)
        c = jnp.clip(cov / (jnp.sqrt(vp * vt) + 1e-8), -0.99, 0.99)
        val = jnp.where(jnp.isnan(c) | jnp.isinf(c), 0.0, 1.0 - jnp.abs(c))
        return jnp.where((vp < 1e-8) | (vt < 1e-8), 0.0, val)

    total = (steer + accel + cw * corr_loss_fn(ps, pa) + iw * indep_loss_fn(ps, pa)
             + pw * (pearson_fn(ps, ts) + pearson_fn(pa, ta)))
    return total, steer, accel


if __name__ == "__main__":
    base_key = jax.random.PRNGKey(0)

    def run_case(batch, max_block_rows=2048):
        k1, k2, k3, k4 = jax.random.split(jax.random.fold_in(base_key, batch), 4)
        ps = jax.random.normal(k1, (batch,), dtype=jnp.float32)
        pa = jax.random.normal(k2, (batch,), dtype=jnp.float32)
        ts = jax.random.normal(k3, (batch,), dtype=jnp.float32)
        ta = jax.random.normal(k4, (batch,), dtype=jnp.float32)

        got = sequential_accel_steering_loss(
            ps, pa, ts, ta, corr_weight=1.0, indep_weight=1.0,
            pearson_weight=1.0, max_block_rows=max_block_rows)
        jax.block_until_ready(got)

        want = _reference(ps, pa, ts, ta)
        for g, w in zip(got, want):
            np.testing.assert_allclose(np.array(g), np.array(w),
                                       rtol=1e-3, atol=1e-3)

    # tiny batch (ragged rows + fully-masked second-core block)
    run_case(8)
    # multi-chunk streaming per core, unmasked fast path (rows % br == 0)
    run_case(64 * 128, max_block_rows=16)
    # ragged lane tail (n % 128 != 0)
    run_case(1000, max_block_rows=16)

    print("KERNEL_OK")
</pallas_src>

<mosaic_0001>
module attributes {stable_mosaic.version = 11 : i64} {
  func.func @_stats_kernel(%arg0: i32, %arg1: i32, %arg2: memref<8x128xf32, #tpu.memory_space<vmem>>, %arg3: memref<8x128xf32, #tpu.memory_space<vmem>>, %arg4: memref<8x128xf32, #tpu.memory_space<vmem>>, %arg5: memref<8x128xf32, #tpu.memory_space<vmem>>, %arg6: memref<1x11x8x128xf32, #tpu.memory_space<vmem>>, %arg7: memref<11x8x128xf32, #tpu.memory_space<vmem>>) attributes {dimension_semantics = [#tpu.dimension_semantics<parallel>, #tpu.dimension_semantics<arbitrary>], iteration_bounds = array<i64: 2, 1>, scalar_prefetch = 0 : i64, scratch_operands = 1 : i64, tpu.core_type = #tpu.core_type<tc>, window_params = [{transform_indices = @transform_0, window_bounds = array<i64: 8, 128>}, {transform_indices = @transform_1, window_bounds = array<i64: 8, 128>}, {transform_indices = @transform_2, window_bounds = array<i64: 8, 128>}, {transform_indices = @transform_3, window_bounds = array<i64: 8, 128>}, {transform_indices = @transform_4, window_bounds = array<i64: 1, 11, 8, 128>}]} {
    %c0_i32 = arith.constant 0 : i32
    %0 = arith.cmpi eq, %arg1, %c0_i32 : i32
    %1 = arith.extui %0 : i1 to i32
    %c0_i32_0 = arith.constant 0 : i32
    %2 = arith.cmpi ne, %1, %c0_i32_0 : i32
    scf.if %2 {
      %cst = arith.constant 0.000000e+00 : f32
      %20 = vector.broadcast %cst : f32 to vector<11x8x128xf32>
      %c0_14 = arith.constant 0 : index
      %c0_15 = arith.constant 0 : index
      %c0_16 = arith.constant 0 : index
      %21 = vector.load %arg7[%c0_14, %c0_15, %c0_16] : memref<11x8x128xf32, #tpu.memory_space<vmem>>, vector<11x8x128xf32>
      tpu.vector_store %arg7[%c0_14, %c0_15, %c0_16], %20 {strides = array<i32>} : memref<11x8x128xf32, #tpu.memory_space<vmem>>, vector<11x8x128xf32>,
    } else {
    }
    %c0 = arith.constant 0 : index
    %c0_1 = arith.constant 0 : index
    %3 = vector.load %arg2[%c0, %c0_1] : memref<8x128xf32, #tpu.memory_space<vmem>>, vector<8x128xf32>
    %c0_2 = arith.constant 0 : index
    %c0_3 = arith.constant 0 : index
    %4 = vector.load %arg3[%c0_2, %c0_3] : memref<8x128xf32, #tpu.memory_space<vmem>>, vector<8x128xf32>
    %c0_4 = arith.constant 0 : index
    %c0_5 = arith.constant 0 : index
    %5 = vector.load %arg4[%c0_4, %c0_5] : memref<8x128xf32, #tpu.memory_space<vmem>>, vector<8x128xf32>
    %c0_6 = arith.constant 0 : index
    %c0_7 = arith.constant 0 : index
    %6 = vector.load %arg5[%c0_6, %c0_7] : memref<8x128xf32, #tpu.memory_space<vmem>>, vector<8x128xf32>
    %c1_i32 = arith.constant 1 : i32
    %7 = arith.muli %arg0, %c1_i32 : i32
    %8 = arith.addi %7, %arg1 : i32
    %c8_i32 = arith.constant 8 : i32
    %9 = arith.muli %8, %c8_i32 : i32
    %c8_i32_8 = arith.constant 8 : i32
    %10 = arith.addi %9, %c8_i32_8 : i32
    %c1_i32_9 = arith.constant 1 : i32
    %11 = arith.cmpi sle, %10, %c1_i32_9 : i32
    %12 = arith.extui %11 : i1 to i32
    %c0_i32_10 = arith.constant 0 : i32
    %13 = arith.cmpi ne, %12, %c0_i32_10 : i32
    scf.if %13 {
      %c0_14 = arith.constant 0 : index
      %c0_15 = arith.constant 0 : index
      %c0_16 = arith.constant 0 : index
      %20 = vector.load %arg7[%c0_14, %c0_15, %c0_16] : memref<11x8x128xf32, #tpu.memory_space<vmem>>, vector<1x8x128xf32>
      %21 = vector.shape_cast %20 : vector<1x8x128xf32> to vector<8x128xf32>
      %22 = arith.addf %21, %3 : vector<8x128xf32>
      %c0_17 = arith.constant 0 : index
      %c0_18 = arith.constant 0 : index
      %c0_19 = arith.constant 0 : index
      %23 = vector.load %arg7[%c0_17, %c0_18, %c0_19] : memref<11x8x128xf32, #tpu.memory_space<vmem>>, vector<1x8x128xf32>
      %24 = vector.shape_cast %23 : vector<1x8x128xf32> to vector<8x128xf32>
      %25 = vector.shape_cast %22 : vector<8x128xf32> to vector<1x8x128xf32>
      tpu.vector_store %arg7[%c0_17, %c0_18, %c0_19], %25 {strides = array<i32>} : memref<11x8x128xf32, #tpu.memory_space<vmem>>, vector<1x8x128xf32>,
      %c1 = arith.constant 1 : index
      %c0_20 = arith.constant 0 : index
      %c0_21 = arith.constant 0 : index
      %26 = vector.load %arg7[%c1, %c0_20, %c0_21] : memref<11x8x128xf32, #tpu.memory_space<vmem>>, vector<1x8x128xf32>
      %27 = vector.shape_cast %26 : vector<1x8x128xf32> to vector<8x128xf32>
      %28 = arith.addf %27, %4 : vector<8x128xf32>
      %c1_22 = arith.constant 1 : index
      %c0_23 = arith.constant 0 : index
      %c0_24 = arith.constant 0 : index
      %29 = vector.load %arg7[%c1_22, %c0_23, %c0_24] : memref<11x8x128xf32, #tpu.memory_space<vmem>>, vector<1x8x128xf32>
      %30 = vector.shape_cast %29 : vector<1x8x128xf32> to vector<8x128xf32>
      %31 = vector.shape_cast %28 : vector<8x128xf32> to vector<1x8x128xf32>
      tpu.vector_store %arg7[%c1_22, %c0_23, %c0_24], %31 {strides = array<i32>} : memref<11x8x128xf32, #tpu.memory_space<vmem>>, vector<1x8x128xf32>,
      %c2 = arith.constant 2 : index
      %c0_25 = arith.constant 0 : index
      %c0_26 = arith.constant 0 : index
      %32 = vector.load %arg7[%c2, %c0_25, %c0_26] : memref<11x8x128xf32, #tpu.memory_space<vmem>>, vector<1x8x128xf32>
      %33 = vector.shape_cast %32 : vector<1x8x128xf32> to vector<8x128xf32>
      %34 = arith.addf %33, %5 : vector<8x128xf32>
      %c2_27 = arith.constant 2 : index
      %c0_28 = arith.constant 0 : index
      %c0_29 = arith.constant 0 : index
      %35 = vector.load %arg7[%c2_27, %c0_28, %c0_29] : memref<11x8x128xf32, #tpu.memory_space<vmem>>, vector<1x8x128xf32>
      %36 = vector.shape_cast %35 : vector<1x8x128xf32> to vector<8x128xf32>
      %37 = vector.shape_cast %34 : vector<8x128xf32> to vector<1x8x128xf32>
      tpu.vector_store %arg7[%c2_27, %c0_28, %c0_29], %37 {strides = array<i32>} : memref<11x8x128xf32, #tpu.memory_space<vmem>>, vector<1x8x128xf32>,
      %c3 = arith.constant 3 : index
      %c0_30 = arith.constant 0 : index
      %c0_31 = arith.constant 0 : index
      %38 = vector.load %arg7[%c3, %c0_30, %c0_31] : memref<11x8x128xf32, #tpu.memory_space<vmem>>, vector<1x8x128xf32>
      %39 = vector.shape_cast %38 : vector<1x8x128xf32> to vector<8x128xf32>
      %40 = arith.addf %39, %6 : vector<8x128xf32>
      %c3_32 = arith.constant 3 : index
      %c0_33 = arith.constant 0 : index
      %c0_34 = arith.constant 0 : index
      %41 = vector.load %arg7[%c3_32, %c0_33, %c0_34] : memref<11x8x128xf32, #tpu.memory_space<vmem>>, vector<1x8x128xf32>
      %42 = vector.shape_cast %41 : vector<1x8x128xf32> to vector<8x128xf32>
      %43 = vector.shape_cast %40 : vector<8x128xf32> to vector<1x8x128xf32>
      tpu.vector_store %arg7[%c3_32, %c0_33, %c0_34], %43 {strides = array<i32>} : memref<11x8x128xf32, #tpu.memory_space<vmem>>, vector<1x8x128xf32>,
      %c4 = arith.constant 4 : index
      %c0_35 = arith.constant 0 : index
      %c0_36 = arith.constant 0 : index
      %44 = vector.load %arg7[%c4, %c0_35, %c0_36] : memref<11x8x128xf32, #tpu.memory_space<vmem>>, vector<1x8x128xf32>
      %45 = vector.shape_cast %44 : vector<1x8x128xf32> to vector<8x128xf32>
      %46 = arith.mulf %3, %3 : vector<8x128xf32>
      %47 = arith.addf %45, %46 : vector<8x128xf32>
      %c4_37 = arith.constant 4 : index
      %c0_38 = arith.constant 0 : index
      %c0_39 = arith.constant 0 : index
      %48 = vector.load %arg7[%c4_37, %c0_38, %c0_39] : memref<11x8x128xf32, #tpu.memory_space<vmem>>, vector<1x8x128xf32>
      %49 = vector.shape_cast %48 : vector<1x8x128xf32> to vector<8x128xf32>
      %50 = vector.shape_cast %47 : vector<8x128xf32> to vector<1x8x128xf32>
      tpu.vector_store %arg7[%c4_37, %c0_38, %c0_39], %50 {strides = array<i32>} : memref<11x8x128xf32, #tpu.memory_space<vmem>>, vector<1x8x128xf32>,
      %c5 = arith.constant 5 : index
      %c0_40 = arith.constant 0 : index
      %c0_41 = arith.constant 0 : index
      %51 = vector.load %arg7[%c5, %c0_40, %c0_41] : memref<11x8x128xf32, #tpu.memory_space<vmem>>, vector<1x8x128xf32>
      %52 = vector.shape_cast %51 : vector<1x8x128xf32> to vector<8x128xf32>
      %53 = arith.mulf %4, %4 : vector<8x128xf32>
      %54 = arith.addf %52, %53 : vector<8x128xf32>
      %c5_42 = arith.constant 5 : index
      %c0_43 = arith.constant 0 : index
      %c0_44 = arith.constant 0 : index
      %55 = vector.load %arg7[%c5_42, %c0_43, %c0_44] : memref<11x8x128xf32, #tpu.memory_space<vmem>>, vector<1x8x128xf32>
      %56 = vector.shape_cast %55 : vector<1x8x128xf32> to vector<8x128xf32>
      %57 = vector.shape_cast %54 : vector<8x128xf32> to vector<1x8x128xf32>
      tpu.vector_store %arg7[%c5_42, %c0_43, %c0_44], %57 {strides = array<i32>} : memref<11x8x128xf32, #tpu.memory_space<vmem>>, vector<1x8x128xf32>,
      %c6 = arith.constant 6 : index
      %c0_45 = arith.constant 0 : index
      %c0_46 = arith.constant 0 : index
      %58 = vector.load %arg7[%c6, %c0_45, %c0_46] : memref<11x8x128xf32, #tpu.memory_space<vmem>>, vector<1x8x128xf32>
      %59 = vector.shape_cast %58 : vector<1x8x128xf32> to vector<8x128xf32>
      %60 = arith.mulf %5, %5 : vector<8x128xf32>
      %61 = arith.addf %59, %60 : vector<8x128xf32>
      %c6_47 = arith.constant 6 : index
      %c0_48 = arith.constant 0 : index
      %c0_49 = arith.constant 0 : index
      %62 = vector.load %arg7[%c6_47, %c0_48, %c0_49] : memref<11x8x128xf32, #tpu.memory_space<vmem>>, vector<1x8x128xf32>
      %63 = vector.shape_cast %62 : vector<1x8x128xf32> to vector<8x128xf32>
      %64 = vector.shape_cast %61 : vector<8x128xf32> to vector<1x8x128xf32>
      tpu.vector_store %arg7[%c6_47, %c0_48, %c0_49], %64 {strides = array<i32>} : memref<11x8x128xf32, #tpu.memory_space<vmem>>, vector<1x8x128xf32>,
      %c7 = arith.constant 7 : index
      %c0_50 = arith.constant 0 : index
      %c0_51 = arith.constant 0 : index
      %65 = vector.load %arg7[%c7, %c0_50, %c0_51] : memref<11x8x128xf32, #tpu.memory_space<vmem>>, vector<1x8x128xf32>
      %66 = vector.shape_cast %65 : vector<1x8x128xf32> to vector<8x128xf32>
      %67 = arith.mulf %6, %6 : vector<8x128xf32>
      %68 = arith.addf %66, %67 : vector<8x128xf32>
      %c7_52 = arith.constant 7 : index
      %c0_53 = arith.constant 0 : index
      %c0_54 = arith.constant 0 : index
      %69 = vector.load %arg7[%c7_52, %c0_53, %c0_54] : memref<11x8x128xf32, #tpu.memory_space<vmem>>, vector<1x8x128xf32>
      %70 = vector.shape_cast %69 : vector<1x8x128xf32> to vector<8x128xf32>
      %71 = vector.shape_cast %68 : vector<8x128xf32> to vector<1x8x128xf32>
      tpu.vector_store %arg7[%c7_52, %c0_53, %c0_54], %71 {strides = array<i32>} : memref<11x8x128xf32, #tpu.memory_space<vmem>>, vector<1x8x128xf32>,
      %c8 = arith.constant 8 : index
      %c0_55 = arith.constant 0 : index
      %c0_56 = arith.constant 0 : index
      %72 = vector.load %arg7[%c8, %c0_55, %c0_56] : memref<11x8x128xf32, #tpu.memory_space<vmem>>, vector<1x8x128xf32>
      %73 = vector.shape_cast %72 : vector<1x8x128xf32> to vector<8x128xf32>
      %74 = arith.mulf %3, %4 : vector<8x128xf32>
      %75 = arith.addf %73, %74 : vector<8x128xf32>
      %c8_57 = arith.constant 8 : index
      %c0_58 = arith.constant 0 : index
      %c0_59 = arith.constant 0 : index
      %76 = vector.load %arg7[%c8_57, %c0_58, %c0_59] : memref<11x8x128xf32, #tpu.memory_space<vmem>>, vector<1x8x128xf32>
      %77 = vector.shape_cast %76 : vector<1x8x128xf32> to vector<8x128xf32>
      %78 = vector.shape_cast %75 : vector<8x128xf32> to vector<1x8x128xf32>
      tpu.vector_store %arg7[%c8_57, %c0_58, %c0_59], %78 {strides = array<i32>} : memref<11x8x128xf32, #tpu.memory_space<vmem>>, vector<1x8x128xf32>,
      %c9 = arith.constant 9 : index
      %c0_60 = arith.constant 0 : index
      %c0_61 = arith.constant 0 : index
      %79 = vector.load %arg7[%c9, %c0_60, %c0_61] : memref<11x8x128xf32, #tpu.memory_space<vmem>>, vector<1x8x128xf32>
      %80 = vector.shape_cast %79 : vector<1x8x128xf32> to vector<8x128xf32>
      %81 = arith.mulf %3, %5 : vector<8x128xf32>
      %82 = arith.addf %80, %81 : vector<8x128xf32>
      %c9_62 = arith.constant 9 : index
      %c0_63 = arith.constant 0 : index
      %c0_64 = arith.constant 0 : index
      %83 = vector.load %arg7[%c9_62, %c0_63, %c0_64] : memref<11x8x128xf32, #tpu.memory_space<vmem>>, vector<1x8x128xf32>
      %84 = vector.shape_cast %83 : vector<1x8x128xf32> to vector<8x128xf32>
      %85 = vector.shape_cast %82 : vector<8x128xf32> to vector<1x8x128xf32>
      tpu.vector_store %arg7[%c9_62, %c0_63, %c0_64], %85 {strides = array<i32>} : memref<11x8x128xf32, #tpu.memory_space<vmem>>, vector<1x8x128xf32>,
      %c10 = arith.constant 10 : index
      %c0_65 = arith.constant 0 : index
      %c0_66 = arith.constant 0 : index
      %86 = vector.load %arg7[%c10, %c0_65, %c0_66] : memref<11x8x128xf32, #tpu.memory_space<vmem>>, vector<1x8x128xf32>
      %87 = vector.shape_cast %86 : vector<1x8x128xf32> to vector<8x128xf32>
      %88 = arith.mulf %4, %6 : vector<8x128xf32>
      %89 = arith.addf %87, %88 : vector<8x128xf32>
      %c10_67 = arith.constant 10 : index
      %c0_68 = arith.constant 0 : index
      %c0_69 = arith.constant 0 : index
      %90 = vector.load %arg7[%c10_67, %c0_68, %c0_69] : memref<11x8x128xf32, #tpu.memory_space<vmem>>, vector<1x8x128xf32>
      %91 = vector.shape_cast %90 : vector<1x8x128xf32> to vector<8x128xf32>
      %92 = vector.shape_cast %89 : vector<8x128xf32> to vector<1x8x128xf32>
      tpu.vector_store %arg7[%c10_67, %c0_68, %c0_69], %92 {strides = array<i32>} : memref<11x8x128xf32, #tpu.memory_space<vmem>>, vector<1x8x128xf32>,
    } else {
    }
    %true = arith.constant true
    %14 = arith.xori %11, %true : i1
    %15 = arith.extui %14 : i1 to i32
    %c0_i32_11 = arith.constant 0 : i32
    %16 = arith.cmpi ne, %15, %c0_i32_11 : i32
    scf.if %16 {
      %20 = tpu.iota {dimensions = array<i32: 0>} : vector<8x128xi32>
      %21 = vector.broadcast %9 : i32 to vector<8x128xi32>
      %22 = arith.addi %20, %21 : vector<8x128xi32>
      %c1_i32_14 = arith.constant 1 : i32
      %23 = vector.broadcast %c1_i32_14 : i32 to vector<8x128xi32>
      %24 = arith.cmpi slt, %22, %23 : vector<8x128xi32>
      %cst = arith.constant 0.000000e+00 : f32
      %25 = vector.broadcast %cst : f32 to vector<8x128xf32>
      %26 = arith.select %24, %3, %25 : vector<8x128xi1>, vector<8x128xf32>
      %cst_15 = arith.constant 0.000000e+00 : f32
      %27 = vector.broadcast %cst_15 : f32 to vector<8x128xf32>
      %28 = arith.select %24, %4, %27 : vector<8x128xi1>, vector<8x128xf32>
      %cst_16 = arith.constant 0.000000e+00 : f32
      %29 = vector.broadcast %cst_16 : f32 to vector<8x128xf32>
      %30 = arith.select %24, %5, %29 : vector<8x128xi1>, vector<8x128xf32>
      %cst_17 = arith.constant 0.000000e+00 : f32
      %31 = vector.broadcast %cst_17 : f32 to vector<8x128xf32>
      %32 = arith.select %24, %6, %31 : vector<8x128xi1>, vector<8x128xf32>
      %c0_18 = arith.constant 0 : index
      %c0_19 = arith.constant 0 : index
      %c0_20 = arith.constant 0 : index
      %33 = vector.load %arg7[%c0_18, %c0_19, %c0_20] : memref<11x8x128xf32, #tpu.memory_space<vmem>>, vector<1x8x128xf32>
      %34 = vector.shape_cast %33 : vector<1x8x128xf32> to vector<8x128xf32>
      %35 = arith.addf %34, %26 : vector<8x128xf32>
      %c0_21 = arith.constant 0 : index
      %c0_22 = arith.constant 0 : index
      %c0_23 = arith.constant 0 : index
      %36 = vector.load %arg7[%c0_21, %c0_22, %c0_23] : memref<11x8x128xf32, #tpu.memory_space<vmem>>, vector<1x8x128xf32>
      %37 = vector.shape_cast %36 : vector<1x8x128xf32> to vector<8x128xf32>
      %38 = vector.shape_cast %35 : vector<8x128xf32> to vector<1x8x128xf32>
      tpu.vector_store %arg7[%c0_21, %c0_22, %c0_23], %38 {strides = array<i32>} : memref<11x8x128xf32, #tpu.memory_space<vmem>>, vector<1x8x128xf32>,
      %c1 = arith.constant 1 : index
      %c0_24 = arith.constant 0 : index
      %c0_25 = arith.constant 0 : index
      %39 = vector.load %arg7[%c1, %c0_24, %c0_25] : memref<11x8x128xf32, #tpu.memory_space<vmem>>, vector<1x8x128xf32>
      %40 = vector.shape_cast %39 : vector<1x8x128xf32> to vector<8x128xf32>
      %41 = arith.addf %40, %28 : vector<8x128xf32>
      %c1_26 = arith.constant 1 : index
      %c0_27 = arith.constant 0 : index
      %c0_28 = arith.constant 0 : index
      %42 = vector.load %arg7[%c1_26, %c0_27, %c0_28] : memref<11x8x128xf32, #tpu.memory_space<vmem>>, vector<1x8x128xf32>
      %43 = vector.shape_cast %42 : vector<1x8x128xf32> to vector<8x128xf32>
      %44 = vector.shape_cast %41 : vector<8x128xf32> to vector<1x8x128xf32>
      tpu.vector_store %arg7[%c1_26, %c0_27, %c0_28], %44 {strides = array<i32>} : memref<11x8x128xf32, #tpu.memory_space<vmem>>, vector<1x8x128xf32>,
      %c2 = arith.constant 2 : index
      %c0_29 = arith.constant 0 : index
      %c0_30 = arith.constant 0 : index
      %45 = vector.load %arg7[%c2, %c0_29, %c0_30] : memref<11x8x128xf32, #tpu.memory_space<vmem>>, vector<1x8x128xf32>
      %46 = vector.shape_cast %45 : vector<1x8x128xf32> to vector<8x128xf32>
      %47 = arith.addf %46, %30 : vector<8x128xf32>
      %c2_31 = arith.constant 2 : index
      %c0_32 = arith.constant 0 : index
      %c0_33 = arith.constant 0 : index
      %48 = vector.load %arg7[%c2_31, %c0_32, %c0_33] : memref<11x8x128xf32, #tpu.memory_space<vmem>>, vector<1x8x128xf32>
      %49 = vector.shape_cast %48 : vector<1x8x128xf32> to vector<8x128xf32>
      %50 = vector.shape_cast %47 : vector<8x128xf32> to vector<1x8x128xf32>
      tpu.vector_store %arg7[%c2_31, %c0_32, %c0_33], %50 {strides = array<i32>} : memref<11x8x128xf32, #tpu.memory_space<vmem>>, vector<1x8x128xf32>,
      %c3 = arith.constant 3 : index
      %c0_34 = arith.constant 0 : index
      %c0_35 = arith.constant 0 : index
      %51 = vector.load %arg7[%c3, %c0_34, %c0_35] : memref<11x8x128xf32, #tpu.memory_space<vmem>>, vector<1x8x128xf32>
      %52 = vector.shape_cast %51 : vector<1x8x128xf32> to vector<8x128xf32>
      %53 = arith.addf %52, %32 : vector<8x128xf32>
      %c3_36 = arith.constant 3 : index
      %c0_37 = arith.constant 0 : index
      %c0_38 = arith.constant 0 : index
      %54 = vector.load %arg7[%c3_36, %c0_37, %c0_38] : memref<11x8x128xf32, #tpu.memory_space<vmem>>, vector<1x8x128xf32>
      %55 = vector.shape_cast %54 : vector<1x8x128xf32> to vector<8x128xf32>
      %56 = vector.shape_cast %53 : vector<8x128xf32> to vector<1x8x128xf32>
      tpu.vector_store %arg7[%c3_36, %c0_37, %c0_38], %56 {strides = array<i32>} : memref<11x8x128xf32, #tpu.memory_space<vmem>>, vector<1x8x128xf32>,
      %c4 = arith.constant 4 : index
      %c0_39 = arith.constant 0 : index
      %c0_40 = arith.constant 0 : index
      %57 = vector.load %arg7[%c4, %c0_39, %c0_40] : memref<11x8x128xf32, #tpu.memory_space<vmem>>, vector<1x8x128xf32>
      %58 = vector.shape_cast %57 : vector<1x8x128xf32> to vector<8x128xf32>
      %59 = arith.mulf %26, %26 : vector<8x128xf32>
      %60 = arith.addf %58, %59 : vector<8x128xf32>
      %c4_41 = arith.constant 4 : index
      %c0_42 = arith.constant 0 : index
      %c0_43 = arith.constant 0 : index
      %61 = vector.load %arg7[%c4_41, %c0_42, %c0_43] : memref<11x8x128xf32, #tpu.memory_space<vmem>>, vector<1x8x128xf32>
      %62 = vector.shape_cast %61 : vector<1x8x128xf32> to vector<8x128xf32>
      %63 = vector.shape_cast %60 : vector<8x128xf32> to vector<1x8x128xf32>
      tpu.vector_store %arg7[%c4_41, %c0_42, %c0_43], %63 {strides = array<i32>} : memref<11x8x128xf32, #tpu.memory_space<vmem>>, vector<1x8x128xf32>,
      %c5 = arith.constant 5 : index
      %c0_44 = arith.constant 0 : index
      %c0_45 = arith.constant 0 : index
      %64 = vector.load %arg7[%c5, %c0_44, %c0_45] : memref<11x8x128xf32, #tpu.memory_space<vmem>>, vector<1x8x128xf32>
      %65 = vector.shape_cast %64 : vector<1x8x128xf32> to vector<8x128xf32>
      %66 = arith.mulf %28, %28 : vector<8x128xf32>
      %67 = arith.addf %65, %66 : vector<8x128xf32>
      %c5_46 = arith.constant 5 : index
      %c0_47 = arith.constant 0 : index
      %c0_48 = arith.constant 0 : index
      %68 = vector.load %arg7[%c5_46, %c0_47, %c0_48] : memref<11x8x128xf32, #tpu.memory_space<vmem>>, vector<1x8x128xf32>
      %69 = vector.shape_cast %68 : vector<1x8x128xf32> to vector<8x128xf32>
      %70 = vector.shape_cast %67 : vector<8x128xf32> to vector<1x8x128xf32>
      tpu.vector_store %arg7[%c5_46, %c0_47, %c0_48], %70 {strides = array<i32>} : memref<11x8x128xf32, #tpu.memory_space<vmem>>, vector<1x8x128xf32>,
      %c6 = arith.constant 6 : index
      %c0_49 = arith.constant 0 : index
      %c0_50 = arith.constant 0 : index
      %71 = vector.load %arg7[%c6, %c0_49, %c0_50] : memref<11x8x128xf32, #tpu.memory_space<vmem>>, vector<1x8x128xf32>
      %72 = vector.shape_cast %71 : vector<1x8x128xf32> to vector<8x128xf32>
      %73 = arith.mulf %30, %30 : vector<8x128xf32>
      %74 = arith.addf %72, %73 : vector<8x128xf32>
      %c6_51 = arith.constant 6 : index
      %c0_52 = arith.constant 0 : index
      %c0_53 = arith.constant 0 : index
      %75 = vector.load %arg7[%c6_51, %c0_52, %c0_53] : memref<11x8x128xf32, #tpu.memory_space<vmem>>, vector<1x8x128xf32>
      %76 = vector.shape_cast %75 : vector<1x8x128xf32> to vector<8x128xf32>
      %77 = vector.shape_cast %74 : vector<8x128xf32> to vector<1x8x128xf32>
      tpu.vector_store %arg7[%c6_51, %c0_52, %c0_53], %77 {strides = array<i32>} : memref<11x8x128xf32, #tpu.memory_space<vmem>>, vector<1x8x128xf32>,
      %c7 = arith.constant 7 : index
      %c0_54 = arith.constant 0 : index
      %c0_55 = arith.constant 0 : index
      %78 = vector.load %arg7[%c7, %c0_54, %c0_55] : memref<11x8x128xf32, #tpu.memory_space<vmem>>, vector<1x8x128xf32>
      %79 = vector.shape_cast %78 : vector<1x8x128xf32> to vector<8x128xf32>
      %80 = arith.mulf %32, %32 : vector<8x128xf32>
      %81 = arith.addf %79, %80 : vector<8x128xf32>
      %c7_56 = arith.constant 7 : index
      %c0_57 = arith.constant 0 : index
      %c0_58 = arith.constant 0 : index
      %82 = vector.load %arg7[%c7_56, %c0_57, %c0_58] : memref<11x8x128xf32, #tpu.memory_space<vmem>>, vector<1x8x128xf32>
      %83 = vector.shape_cast %82 : vector<1x8x128xf32> to vector<8x128xf32>
      %84 = vector.shape_cast %81 : vector<8x128xf32> to vector<1x8x128xf32>
      tpu.vector_store %arg7[%c7_56, %c0_57, %c0_58], %84 {strides = array<i32>} : memref<11x8x128xf32, #tpu.memory_space<vmem>>, vector<1x8x128xf32>,
      %c8 = arith.constant 8 : index
      %c0_59 = arith.constant 0 : index
      %c0_60 = arith.constant 0 : index
      %85 = vector.load %arg7[%c8, %c0_59, %c0_60] : memref<11x8x128xf32, #tpu.memory_space<vmem>>, vector<1x8x128xf32>
      %86 = vector.shape_cast %85 : vector<1x8x128xf32> to vector<8x128xf32>
      %87 = arith.mulf %26, %28 : vector<8x128xf32>
      %88 = arith.addf %86, %87 : vector<8x128xf32>
      %c8_61 = arith.constant 8 : index
      %c0_62 = arith.constant 0 : index
      %c0_63 = arith.constant 0 : index
      %89 = vector.load %arg7[%c8_61, %c0_62, %c0_63] : memref<11x8x128xf32, #tpu.memory_space<vmem>>, vector<1x8x128xf32>
      %90 = vector.shape_cast %89 : vector<1x8x128xf32> to vector<8x128xf32>
      %91 = vector.shape_cast %88 : vector<8x128xf32> to vector<1x8x128xf32>
      tpu.vector_store %arg7[%c8_61, %c0_62, %c0_63], %91 {strides = array<i32>} : memref<11x8x128xf32, #tpu.memory_space<vmem>>, vector<1x8x128xf32>,
      %c9 = arith.constant 9 : index
      %c0_64 = arith.constant 0 : index
      %c0_65 = arith.constant 0 : index
      %92 = vector.load %arg7[%c9, %c0_64, %c0_65] : memref<11x8x128xf32, #tpu.memory_space<vmem>>, vector<1x8x128xf32>
      %93 = vector.shape_cast %92 : vector<1x8x128xf32> to vector<8x128xf32>
      %94 = arith.mulf %26, %30 : vector<8x128xf32>
      %95 = arith.addf %93, %94 : vector<8x128xf32>
      %c9_66 = arith.constant 9 : index
      %c0_67 = arith.constant 0 : index
      %c0_68 = arith.constant 0 : index
      %96 = vector.load %arg7[%c9_66, %c0_67, %c0_68] : memref<11x8x128xf32, #tpu.memory_space<vmem>>, vector<1x8x128xf32>
      %97 = vector.shape_cast %96 : vector<1x8x128xf32> to vector<8x128xf32>
      %98 = vector.shape_cast %95 : vector<8x128xf32> to vector<1x8x128xf32>
      tpu.vector_store %arg7[%c9_66, %c0_67, %c0_68], %98 {strides = array<i32>} : memref<11x8x128xf32, #tpu.memory_space<vmem>>, vector<1x8x128xf32>,
      %c10 = arith.constant 10 : index
      %c0_69 = arith.constant 0 : index
      %c0_70 = arith.constant 0 : index
      %99 = vector.load %arg7[%c10, %c0_69, %c0_70] : memref<11x8x128xf32, #tpu.memory_space<vmem>>, vector<1x8x128xf32>
      %100 = vector.shape_cast %99 : vector<1x8x128xf32> to vector<8x128xf32>
      %101 = arith.mulf %28, %32 : vector<8x128xf32>
      %102 = arith.addf %100, %101 : vector<8x128xf32>
      %c10_71 = arith.constant 10 : index
      %c0_72 = arith.constant 0 : index
      %c0_73 = arith.constant 0 : index
      %103 = vector.load %arg7[%c10_71, %c0_72, %c0_73] : memref<11x8x128xf32, #tpu.memory_space<vmem>>, vector<1x8x128xf32>
      %104 = vector.shape_cast %103 : vector<1x8x128xf32> to vector<8x128xf32>
      %105 = vector.shape_cast %102 : vector<8x128xf32> to vector<1x8x128xf32>
      tpu.vector_store %arg7[%c10_71, %c0_72, %c0_73], %105 {strides = array<i32>} : memref<11x8x128xf32, #tpu.memory_space<vmem>>, vector<1x8x128xf32>,
    } else {
    }
    %c0_i32_12 = arith.constant 0 : i32
    %17 = arith.cmpi eq, %arg1, %c0_i32_12 : i32
    %18 = arith.extui %17 : i1 to i32
    %c0_i32_13 = arith.constant 0 : i32
    %19 = arith.cmpi ne, %18, %c0_i32_13 : i32
    scf.if %19 {
      %c0_14 = arith.constant 0 : index
      %c0_15 = arith.constant 0 : index
      %c0_16 = arith.constant 0 : index
      %20 = vector.load %arg7[%c0_14, %c0_15, %c0_16] : memref<11x8x128xf32, #tpu.memory_space<vmem>>, vector<11x8x128xf32>
      %c0_17 = arith.constant 0 : index
      %c0_18 = arith.constant 0 : index
      %c0_19 = arith.constant 0 : index
      %c0_20 = arith.constant 0 : index
      %21 = vector.load %arg6[%c0_17, %c0_18, %c0_19, %c0_20] : memref<1x11x8x128xf32, #tpu.memory_space<vmem>>, vector<1x11x8x128xf32>
      %22 = vector.shape_cast %21 : vector<1x11x8x128xf32> to vector<11x8x128xf32>
      %23 = vector.shape_cast %20 : vector<11x8x128xf32> to vector<1x11x8x128xf32>
      tpu.vector_store %arg6[%c0_17, %c0_18, %c0_19, %c0_20], %23 {strides = array<i32>} : memref<1x11x8x128xf32, #tpu.memory_space<vmem>>, vector<1x11x8x128xf32>,
    } else {
    }
    return
  }
  func.func @transform_0(%arg0: i32, %arg1: i32) -> (i32, i32) {
    %c1_i32 = arith.constant 1 : i32
    %0 = arith.muli %arg0, %c1_i32 : i32
    %1 = arith.addi %0, %arg1 : i32
    %c0_i32 = arith.constant 0 : i32
    %2 = arith.minsi %1, %c0_i32 : i32
    %c0_i32_0 = arith.constant 0 : i32
    %c0_i32_1 = arith.constant 0 : i32
    return %2, %c0_i32_0 : i32, i32
  }
  func.func @transform_1(%arg0: i32, %arg1: i32) -> (i32, i32) {
    %c1_i32 = arith.constant 1 : i32
    %0 = arith.muli %arg0, %c1_i32 : i32
    %1 = arith.addi %0, %arg1 : i32
    %c0_i32 = arith.constant 0 : i32
    %2 = arith.minsi %1, %c0_i32 : i32
    %c0_i32_0 = arith.constant 0 : i32
    %c0_i32_1 = arith.constant 0 : i32
    return %2, %c0_i32_0 : i32, i32
  }
  func.func @transform_2(%arg0: i32, %arg1: i32) -> (i32, i32) {
    %c1_i32 = arith.constant 1 : i32
    %0 = arith.muli %arg0, %c1_i32 : i32
    %1 = arith.addi %0, %arg1 : i32
    %c0_i32 = arith.constant 0 : i32
    %2 = arith.minsi %1, %c0_i32 : i32
    %c0_i32_0 = arith.constant 0 : i32
    %c0_i32_1 = arith.constant 0 : i32
    return %2, %c0_i32_0 : i32, i32
  }
  func.func @transform_3(%arg0: i32, %arg1: i32) -> (i32, i32) {
    %c1_i32 = arith.constant 1 : i32
    %0 = arith.muli %arg0, %c1_i32 : i32
    %1 = arith.addi %0, %arg1 : i32
    %c0_i32 = arith.constant 0 : i32
    %2 = arith.minsi %1, %c0_i32 : i32
    %c0_i32_0 = arith.constant 0 : i32
    %c0_i32_1 = arith.constant 0 : i32
    return %2, %c0_i32_0 : i32, i32
  }
  func.func @transform_4(%arg0: i32, %arg1: i32) -> (i32, i32, i32, i32) {
    %c0_i32 = arith.constant 0 : i32
    %c0_i32_0 = arith.constant 0 : i32
    %c0_i32_1 = arith.constant 0 : i32
    %c0_i32_2 = arith.constant 0 : i32
    return %arg0, %c0_i32, %c0_i32_0, %c0_i32_1 : i32, i32, i32, i32
  }
}

</mosaic_0001>

<llo_original>
// kernel: tpu_custom_call.1
$region0: #{tpu_custom_call.1}
  #allocation0 [shape = 'u32[]', space=smem, size = 0x4, offset = 0x4, fixed_abs, tag = 'smem constant byte address 0x4 - core index']
  #allocation1 [shape = 'u32[144,128]{1,0:T(1,128)}', space=vmem, size = 0x12000, scoped, tag = 'internal scratch']
  #allocation2 [shape = 'f32[11,8,128]{2,1,0:T(8,128)}', space=vmem, size = 0xb000, scoped, tag = 'scratch operand']
  %s0 = inlined_call_operand.hbm [shape: f32[1,128], index: 0, kind: input, shape index: {}]
  %s1 = inlined_call_operand.vmem [shape: f32[1,128], index: 1, kind: input, shape index: {}]
  %s2 = inlined_call_operand.vmem [shape: f32[1,128], index: 2, kind: input, shape index: {}]
  %s3 = inlined_call_operand.vmem [shape: f32[1,128], index: 3, kind: input, shape index: {}]
  %s4 = inlined_call_operand.hbm [shape: f32[2,11,8,128], index: 4, kind: output, shape index: {}]
  %s5 = sld [smem:[#allocation0]]
  $region69: #{tpu_custom_call.1} parent=0
    _
  %s7 = ssub.s32 1, %s5
  %s8 = scalar_select 0, %s7, %s5
  $region1: #{tpu_custom_call.1} parent=0
    #allocation3 [shape = 'u8[8192]{0}', space=vmem, size = 0x2000, scoped, tag = 'input window, operand 0']
    #allocation4 [shape = 's32[2]{0}', space=sflag, size = 0x8, scoped, tag = 'scoped memory for tpu_custom_call.1']
    #allocation5 [shape = 's32[2]{0}', space=sflag, size = 0x8, scoped, tag = 'scoped memory for tpu_custom_call.1']
    #allocation6 [shape = 'u8[90112]{0}', space=vmem, size = 0x16000, scoped, tag = 'output window, operand 0']
    %9 = vsyncpa [#allocation4], 0
    %s10 = scalar_lea.sflag [#allocation4], 1
    %11 = vsyncpa %s10, 0
    %12 = vsyncpa [#allocation5], 0
    %s13 = scalar_lea.sflag [#allocation5], 1
    %14 = vsyncpa %s13, 0
    loop: start=0, step=1, limit=4
    $region2: #{tpu_custom_call.1} parent=1 // loop_pre_header
      _
    $region3: #{tpu_custom_call.1} parent=1 // loop_header
      %s16 = sphi 0, %s20
      %p17 = scmp.ge.s32.totalorder %s16, 4
      %s23 = sphi 0, %s35
      %s24 = sphi 0, %s31
      %s25 = sphi 0, %s23
      %s26 = sphi 0, %s24
      %s27 = sphi 0, %s25
      %s28 = sphi 0, %s26
      %s44 = sphi 0, %s46
      %s47 = sphi 0, %s44
      %s48 = sphi 0, %s47
      %s64 = sphi 0, %s48
      %s76 = sphi 0, %s78
      %s79 = sphi 0, %s76
      %s80 = sphi 0, %s79
      %s96 = sphi 0, %s80
      %s108 = sphi 0, %s110
      %s111 = sphi 0, %s108
      %s112 = sphi 0, %s111
      %s128 = sphi 0, %s112
      %s140 = sphi 0, %s142
      %s143 = sphi 0, %s140
      %s144 = sphi 0, %s143
      %s160 = sphi 0, %s144
      %s166 = sphi 0, %s168
      %s169 = sphi 0, %s166
      %s170 = sphi 0, %s169
      %s186 = sphi 0, %s170
    $region4: #{tpu_custom_call.1} parent=1 // loop_header_branch
      %19 = sbr.rel (%p17) target = $region8
    $region5: #{tpu_custom_call.1} parent=1 // loop_body
      %s21 = ssub.s32 %s16, 1
      %s22 = ssub.s32 %s16, 2
      %s29 = sadd.s32 1, %s24
      %p30 = scmp.ge.s32.totalorder %s29, 1
      %s31 = scalar_select %p30, 0, %s29
      %s32 = sadd.s32 1, %s23
      %s33 = scalar_select %p30, %s32, %s23
      %p34 = scmp.ge.s32.totalorder %s33, 2
      %s35 = scalar_select %p34, 0, %s33
      %s36 = sadd.s32 %s23, %s24
      %p37 = scmp.lt.s32.totalorder %s36, 0
      %s38 = scalar_select %p37, %s36, 0
      %s39 = sadd.s32 %s35, %s31
      %p40 = scmp.lt.s32.totalorder %s39, 0
      %s41 = scalar_select %p40, %s39, 0
      %s42 = ssub.s32 %s38, %s41
      %p43 = scmp.eq.s32.totalorder %s42, 0
      %s45 = sadd.s32 %s44, 1
      %s46 = scalar_select %p43, %s44, %s45
      %p49 = pneg %p43
      %p50 = scmp.eq.s32.totalorder %s16, 1
      %p51 = por %p49, %p50
      %p52 = scmp.ne.s32.totalorder %s44, %s47
      %p53 = scmp.eq.s32.totalorder %s16, 0
      %p54 = por %p52, %p53
      %p55 = scmp.ne.s32.totalorder %s44, %s47
      %p56 = scmp.eq.s32.totalorder %s21, 1
      %p57 = por %p55, %p56
      %p58 = scmp.ne.s32.totalorder %s47, %s48
      %p59 = scmp.eq.s32.totalorder %s21, 0
      %p60 = por %p58, %p59
      %p61 = scmp.ne.s32.totalorder %s47, %s48
      %p62 = scmp.eq.s32.totalorder %s22, 1
      %p63 = por %p61, %p62
      %p65 = scmp.ne.s32.totalorder %s48, %s64
      %p66 = scmp.eq.s32.totalorder %s22, 0
      %p67 = por %p65, %p66
      %s68 = sadd.s32 %s23, %s24
      %p69 = scmp.lt.s32.totalorder %s68, 0
      %s70 = scalar_select %p69, %s68, 0
      %s71 = sadd.s32 %s35, %s31
      %p72 = scmp.lt.s32.totalorder %s71, 0
      %s73 = scalar_select %p72, %s71, 0
      %s74 = ssub.s32 %s70, %s73
      %p75 = scmp.eq.s32.totalorder %s74, 0
      %s77 = sadd.s32 %s76, 1
      %s78 = scalar_select %p75, %s76, %s77
      %p81 = pneg %p75
      %p82 = scmp.eq.s32.totalorder %s16, 1
      %p83 = por %p81, %p82
      %p84 = scmp.ne.s32.totalorder %s76, %s79
      %p85 = scmp.eq.s32.totalorder %s16, 0
      %p86 = por %p84, %p85
      %p87 = scmp.ne.s32.totalorder %s76, %s79
      %p88 = scmp.eq.s32.totalorder %s21, 1
      %p89 = por %p87, %p88
      %p90 = scmp.ne.s32.totalorder %s79, %s80
      %p91 = scmp.eq.s32.totalorder %s21, 0
      %p92 = por %p90, %p91
      %p93 = scmp.ne.s32.totalorder %s79, %s80
      %p94 = scmp.eq.s32.totalorder %s22, 1
      %p95 = por %p93, %p94
      %p97 = scmp.ne.s32.totalorder %s80, %s96
      %p98 = scmp.eq.s32.totalorder %s22, 0
      %p99 = por %p97, %p98
      %s100 = sadd.s32 %s23, %s24
      %p101 = scmp.lt.s32.totalorder %s100, 0
      %s102 = scalar_select %p101, %s100, 0
      %s103 = sadd.s32 %s35, %s31
      %p104 = scmp.lt.s32.totalorder %s103, 0
      %s105 = scalar_select %p104, %s103, 0
      %s106 = ssub.s32 %s102, %s105
      %p107 = scmp.eq.s32.totalorder %s106, 0
      %s109 = sadd.s32 %s108, 1
      %s110 = scalar_select %p107, %s108, %s109
      %p113 = pneg %p107
      %p114 = scmp.eq.s32.totalorder %s16, 1
      %p115 = por %p113, %p114
      %p116 = scmp.ne.s32.totalorder %s108, %s111
      %p117 = scmp.eq.s32.totalorder %s16, 0
      %p118 = por %p116, %p117
      %p119 = scmp.ne.s32.totalorder %s108, %s111
      %p120 = scmp.eq.s32.totalorder %s21, 1
      %p121 = por %p119, %p120
      %p122 = scmp.ne.s32.totalorder %s111, %s112
      %p123 = scmp.eq.s32.totalorder %s21, 0
      %p124 = por %p122, %p123
      %p125 = scmp.ne.s32.totalorder %s111, %s112
      %p126 = scmp.eq.s32.totalorder %s22, 1
      %p127 = por %p125, %p126
      %p129 = scmp.ne.s32.totalorder %s112, %s128
      %p130 = scmp.eq.s32.totalorder %s22, 0
      %p131 = por %p129, %p130
      %s132 = sadd.s32 %s23, %s24
      %p133 = scmp.lt.s32.totalorder %s132, 0
      %s134 = scalar_select %p133, %s132, 0
      %s135 = sadd.s32 %s35, %s31
      %p136 = scmp.lt.s32.totalorder %s135, 0
      %s137 = scalar_select %p136, %s135, 0
      %s138 = ssub.s32 %s134, %s137
      %p139 = scmp.eq.s32.totalorder %s138, 0
      %s141 = sadd.s32 %s140, 1
      %s142 = scalar_select %p139, %s140, %s141
      %p145 = pneg %p139
      %p146 = scmp.eq.s32.totalorder %s16, 1
      %p147 = por %p145, %p146
      %p148 = scmp.ne.s32.totalorder %s140, %s143
      %p149 = scmp.eq.s32.totalorder %s16, 0
      %p150 = por %p148, %p149
      %p151 = scmp.ne.s32.totalorder %s140, %s143
      %p152 = scmp.eq.s32.totalorder %s21, 1
      %p153 = por %p151, %p152
      %p154 = scmp.ne.s32.totalorder %s143, %s144
      %p155 = scmp.eq.s32.totalorder %s21, 0
      %p156 = por %p154, %p155
      %p157 = scmp.ne.s32.totalorder %s143, %s144
      %p158 = scmp.eq.s32.totalorder %s22, 1
      %p159 = por %p157, %p158
      %p161 = scmp.ne.s32.totalorder %s144, %s160
      %p162 = scmp.eq.s32.totalorder %s22, 0
      %p163 = por %p161, %p162
      %s164 = ssub.s32 %s23, %s35
      %p165 = scmp.eq.s32.totalorder %s164, 0
      %s167 = sadd.s32 %s166, 1
      %s168 = scalar_select %p165, %s166, %s167
      %p171 = pneg %p165
      %p172 = scmp.eq.s32.totalorder %s16, 1
      %p173 = por %p171, %p172
      %p174 = scmp.ne.s32.totalorder %s166, %s169
      %p175 = scmp.eq.s32.totalorder %s16, 0
      %p176 = por %p174, %p175
      %p177 = scmp.ne.s32.totalorder %s166, %s169
      %p178 = scmp.eq.s32.totalorder %s21, 1
      %p179 = por %p177, %p178
      %p180 = scmp.ne.s32.totalorder %s169, %s170
      %p181 = scmp.eq.s32.totalorder %s21, 0
      %p182 = por %p180, %p181
      %p183 = scmp.ne.s32.totalorder %s169, %s170
      %p184 = scmp.eq.s32.totalorder %s22, 1
      %p185 = por %p183, %p184
      %p187 = scmp.ne.s32.totalorder %s170, %s186
      %p188 = scmp.eq.s32.totalorder %s22, 0
      %p189 = por %p187, %p188
      %p190 = scmp.le.s32.totalorder 1, %s16
      %p191 = scmp.lt.s32.totalorder %s16, 3
      %p192 = pnand %p190, %p191
      %p193 = pneg %p192
      // Predicated region
      $region9: #{tpu_custom_call.1} parent=5 // pred_check
        _
      $region10: #{tpu_custom_call.1} parent=5 // pred_check_branch
        %195 = sbr.rel (%p192) target = $region12
      $region11: #{tpu_custom_call.1} parent=5 // pred_region
        %s196 = ssub.s32 %s16, 1
      $region12: #{tpu_custom_call.1} parent=5 // pred_fallthru
        _
      %p197 = scmp.lt.s32.totalorder %s16, 2
      // Predicated region
      $region13: #{tpu_custom_call.1} parent=5 // pred_check
        %p198 = pneg %p197
      $region14: #{tpu_custom_call.1} parent=5 // pred_check_branch
        %200 = sbr.rel (%p198) target = $region16
      $region15: #{tpu_custom_call.1} parent=5 // pred_region
        // Predicated region
        $region17: #{tpu_custom_call.1} parent=15 // pred_check
          %p201 = pneg %p54
        $region18: #{tpu_custom_call.1} parent=15 // pred_check_branch
          %203 = sbr.rel (%p201) target = $region20
        $region19: #{tpu_custom_call.1} parent=15 // pred_region
          %s204 = sand.u32 %s44, 1
          %s205 = scalar_lea.sflag [#allocation4], %s204
          %s206 = sand.u32 %s44, 1
          %s207 = smul.addr %s206, 8
          %s208 = scalar_lea.vmem [#allocation3], %s207
          %s209 = sadd.s32 %s23, %s24
          %p210 = scmp.lt.s32.totalorder %s209, 0
          %s211 = scalar_select %p210, %s209, 0
          %s212 = smul.u32 8, %s211
          %s213 = ssub.s32 1, %s212
          %s214 = smul.u32 16, %s213
          %s216 = ssub.s32 128, %s214
          %217 = vsyncadd %s205, %s216
          %p218 = scmp.ne.s32.totalorder 0, %s214
          %s219 = smul.addr %s212, 16
          %s220 = scalar_lea.hbm %s0, %s219
          %s221 = sshll.u32 %s208, 4
          %s222 = int_to_ptr.vmem [resolvable:$true] %s221
          %s223 = sshll.u32 %s213, 4
          %227 = dma.hbm_to_vmem [thread:$0]  (%p218), %s220, %s223, %s222, %s205, 16, 16, 1
        $region20: #{tpu_custom_call.1} parent=15 // pred_fallthru
          _
        // Predicated region
        $region21: #{tpu_custom_call.1} parent=15 // pred_check
          %p228 = pneg %p86
        $region22: #{tpu_custom_call.1} parent=15 // pred_check_branch
          %230 = sbr.rel (%p228) target = $region24
        $region23: #{tpu_custom_call.1} parent=15 // pred_region
          %s231 = sadd.s32 %s23, %s24
          %p232 = scmp.lt.s32.totalorder %s231, 0
          %s233 = scalar_select %p232, %s231, 0
          %s234 = smul.u32 8, %s233
          %s235 = ssub.s32 1, %s234
          %s236 = smul.u32 16, %s235
          %p237 = scmp.lt.s32.totalorder %s234, 0
          %s238 = scalar_select %p237, %s234, 0
          %s239 = scalar_lea.vmem %s1, %s238
          %s240 = sadd.s32 %s23, %s24
          %p241 = scmp.lt.s32.totalorder %s240, 0
          %s242 = scalar_select %p241, %s240, 0
          %s243 = smul.u32 8, %s242
          %s244 = ssub.s32 1, %s243
          %s245 = smul.u32 16, %s244
        $region24: #{tpu_custom_call.1} parent=15 // pred_fallthru
          _
        // Predicated region
        $region25: #{tpu_custom_call.1} parent=15 // pred_check
          %p246 = pneg %p118
        $region26: #{tpu_custom_call.1} parent=15 // pred_check_branch
          %248 = sbr.rel (%p246) target = $region28
        $region27: #{tpu_custom_call.1} parent=15 // pred_region
          %s249 = sadd.s32 %s23, %s24
          %p250 = scmp.lt.s32.totalorder %s249, 0
          %s251 = scalar_select %p250, %s249, 0
          %s252 = smul.u32 8, %s251
          %s253 = ssub.s32 1, %s252
          %s254 = smul.u32 16, %s253
          %p255 = scmp.lt.s32.totalorder %s252, 0
          %s256 = scalar_select %p255, %s252, 0
          %s257 = scalar_lea.vmem %s2, %s256
          %s258 = sadd.s32 %s23, %s24
          %p259 = scmp.lt.s32.totalorder %s258, 0
          %s260 = scalar_select %p259, %s258, 0
          %s261 = smul.u32 8, %s260
          %s262 = ssub.s32 1, %s261
          %s263 = smul.u32 16, %s262
        $region28: #{tpu_custom_call.1} parent=15 // pred_fallthru
          _
        // Predicated region
        $region29: #{tpu_custom_call.1} parent=15 // pred_check
          %p264 = pneg %p150
        $region30: #{tpu_custom_call.1} parent=15 // pred_check_branch
          %266 = sbr.rel (%p264) target = $region32
        $region31: #{tpu_custom_call.1} parent=15 // pred_region
          %s267 = sadd.s32 %s23, %s24
          %p268 = scmp.lt.s32.totalorder %s267, 0
          %s269 = scalar_select %p268, %s267, 0
          %s270 = smul.u32 8, %s269
          %s271 = ssub.s32 1, %s270
          %s272 = smul.u32 16, %s271
          %p273 = scmp.lt.s32.totalorder %s270, 0
          %s274 = scalar_select %p273, %s270, 0
          %s275 = scalar_lea.vmem %s3, %s274
          %s276 = sadd.s32 %s23, %s24
          %p277 = scmp.lt.s32.totalorder %s276, 0
          %s278 = scalar_select %p277, %s276, 0
          %s279 = smul.u32 8, %s278
          %s280 = ssub.s32 1, %s279
          %s281 = smul.u32 16, %s280
        $region32: #{tpu_custom_call.1} parent=15 // pred_fallthru
          _
      $region16: #{tpu_custom_call.1} parent=5 // pred_fallthru
        _
      %p282 = scmp.le.s32.totalorder 1, %s16
      %p283 = scmp.lt.s32.totalorder %s16, 3
      %p284 = pnand %p282, %p283
      %p285 = pneg %p284
      // Predicated region
      $region33: #{tpu_custom_call.1} parent=5 // pred_check
        _
      $region34: #{tpu_custom_call.1} parent=5 // pred_check_branch
        %287 = sbr.rel (%p284) target = $region36
      $region35: #{tpu_custom_call.1} parent=5 // pred_region
        %s288 = ssub.s32 %s16, 1
        %s289 = sand.u32 %s47, 1
        %s290 = scalar_lea.sflag [#allocation4], %s289
        %s291 = sand.u32 %s47, 1
        %s292 = smul.addr %s291, 8
        %s293 = scalar_lea.vmem [#allocation3], %s292
        // Predicated region
        $region37: #{tpu_custom_call.1} parent=35 // pred_check
          %p294 = pneg %p60
        $region38: #{tpu_custom_call.1} parent=35 // pred_check_branch
          %296 = sbr.rel (%p294) target = $region40
        $region39: #{tpu_custom_call.1} parent=35 // pred_region
          %297 = dma.done %s290, 128
        $region40: #{tpu_custom_call.1} parent=35 // pred_fallthru
          _
        %s298 = sand.u32 %s47, 1
        %s299 = scalar_lea.sflag [#allocation4], %s298
        %s300 = sand.u32 %s47, 1
        %s301 = smul.addr %s300, 8
        %s302 = scalar_lea.vmem [#allocation3], %s301
        %p303 = pneg %p60
        %p304 = pneg %p57
        %s305 = sadd.s32 %s25, %s26
        %p306 = scmp.lt.s32.totalorder %s305, 0
        %s307 = scalar_select %p306, %s305, 0
        %s308 = smul.u32 8, %s307
        %s309 = ssub.s32 1, %s308
        %s310 = smul.u32 16, %s309
        %p311 = scmp.lt.s32.totalorder %s308, 0
        %s312 = scalar_select %p311, %s308, 0
        %s313 = scalar_lea.vmem %s1, %s312
        %p314 = pneg %p92
        %p315 = pneg %p89
        %s316 = sadd.s32 %s25, %s26
        %p317 = scmp.lt.s32.totalorder %s316, 0
        %s318 = scalar_select %p317, %s316, 0
        %s319 = smul.u32 8, %s318
        %s320 = ssub.s32 1, %s319
        %s321 = smul.u32 16, %s320
        %p322 = scmp.lt.s32.totalorder %s319, 0
        %s323 = scalar_select %p322, %s319, 0
        %s324 = scalar_lea.vmem %s2, %s323
        %p325 = pneg %p124
        %p326 = pneg %p121
        %s327 = sadd.s32 %s25, %s26
        %p328 = scmp.lt.s32.totalorder %s327, 0
        %s329 = scalar_select %p328, %s327, 0
        %s330 = smul.u32 8, %s329
        %s331 = ssub.s32 1, %s330
        %s332 = smul.u32 16, %s331
        %p333 = scmp.lt.s32.totalorder %s330, 0
        %s334 = scalar_select %p333, %s330, 0
        %s335 = scalar_lea.vmem %s3, %s334
        %p336 = pneg %p156
        %p337 = pneg %p153
        %p338 = pneg %p182
        %p339 = pneg %p179
        %s340 = sand.u32 %s169, 1
        %s341 = scalar_lea.sflag [#allocation5], %s340
        %s342 = sand.u32 %s169, 1
        %s343 = smul.addr %s342, 88
        %s344 = scalar_lea.vmem [#allocation6], %s343
        %s345 = sadd.s32 %s25, %s26
        %p346 = scmp.lt.s32.totalorder %s345, 0
        %s347 = scalar_select %p346, %s345, 0
        %s348 = smul.u32 8, %s347
        %s349 = ssub.s32 1, %s348
        %s350 = smul.u32 16, %s349
        %s351 = sadd.s32 %s25, %s26
        %p352 = scmp.lt.s32.totalorder %s351, 0
        %s353 = scalar_select %p352, %s351, 0
        %s354 = smul.u32 8, %s353
        %s355 = ssub.s32 1, %s354
        %s356 = smul.u32 16, %s355
        %p357 = scmp.lt.s32.totalorder %s354, 0
        %s358 = scalar_select %p357, %s354, 0
        %s359 = scalar_lea.vmem %s1, %s358
        %s360 = sadd.s32 %s25, %s26
        %p361 = scmp.lt.s32.totalorder %s360, 0
        %s362 = scalar_select %p361, %s360, 0
        %s363 = smul.u32 8, %s362
        %s364 = ssub.s32 1, %s363
        %s365 = smul.u32 16, %s364
        %s366 = sadd.s32 %s25, %s26
        %p367 = scmp.lt.s32.totalorder %s366, 0
        %s368 = scalar_select %p367, %s366, 0
        %s369 = smul.u32 8, %s368
        %s370 = ssub.s32 1, %s369
        %s371 = smul.u32 16, %s370
        %p372 = scmp.lt.s32.totalorder %s369, 0
        %s373 = scalar_select %p372, %s369, 0
        %s374 = scalar_lea.vmem %s2, %s373
        %s375 = sadd.s32 %s25, %s26
        %p376 = scmp.lt.s32.totalorder %s375, 0
        %s377 = scalar_select %p376, %s375, 0
        %s378 = smul.u32 8, %s377
        %s379 = ssub.s32 1, %s378
        %s380 = smul.u32 16, %s379
        %s381 = sadd.s32 %s25, %s26
        %p382 = scmp.lt.s32.totalorder %s381, 0
        %s383 = scalar_select %p382, %s381, 0
        %s384 = smul.u32 8, %s383
        %s385 = ssub.s32 1, %s384
        %s386 = smul.u32 16, %s385
        %p387 = scmp.lt.s32.totalorder %s384, 0
        %s388 = scalar_select %p387, %s384, 0
        %s389 = scalar_lea.vmem %s3, %s388
        %s390 = sadd.s32 %s25, %s26
        %p391 = scmp.lt.s32.totalorder %s390, 0
        %s392 = scalar_select %p391, %s390, 0
        %s393 = smul.u32 8, %s392
        %s394 = ssub.s32 1, %s393
        %s395 = smul.u32 16, %s394
        %p396 = scmp.eq.s32.totalorder %s26, 0
        // Predicated region
        $region41: #{tpu_custom_call.1} parent=35 // pred_check
          %p397 = pneg %p396
        $region42: #{tpu_custom_call.1} parent=35 // pred_check_branch
          %399 = sbr.rel (%p397) target = $region44
        $region43: #{tpu_custom_call.1} parent=35 // pred_region
          %400 = vst [vmem:[#allocation2] sm:$0xff] 0.0
          %401 = vst [vmem:[#allocation2 + $0x8] sm:$0xff] 0.0
          %402 = vst [vmem:[#allocation2 + $0x10] sm:$0xff] 0.0
          %403 = vst [vmem:[#allocation2 + $0x18] sm:$0xff] 0.0
          %404 = vst [vmem:[#allocation2 + $0x20] sm:$0xff] 0.0
          %405 = vst [vmem:[#allocation2 + $0x28] sm:$0xff] 0.0
          %406 = vst [vmem:[#allocation2 + $0x30] sm:$0xff] 0.0
          %407 = vst [vmem:[#allocation2 + $0x38] sm:$0xff] 0.0
          %408 = vst [vmem:[#allocation2 + $0x40] sm:$0xff] 0.0
          %409 = vst [vmem:[#allocation2 + $0x48] sm:$0xff] 0.0
          %410 = vst [vmem:[#allocation2 + $0x50] sm:$0xff] 0.0
        $region44: #{tpu_custom_call.1} parent=35 // pred_fallthru
          _
        %v411 = vld [vmem:[%s293] sm:$0xff]
        %v412 = vld [vmem:[%s359] sm:$0xff]
        %v413 = vld [vmem:[%s374] sm:$0xff]
        %v414 = vld [vmem:[%s389] sm:$0xff]
        %s415 = sadd.s32 %s25, %s26
        %s416 = smul.u32 %s415, 8
        %s417 = sadd.s32 %s416, 8
        %p418 = scmp.le.s32.totalorder %s417, 1
        // Predicated region
        $region45: #{tpu_custom_call.1} parent=35 // pred_check
          %p419 = pneg %p418
        $region46: #{tpu_custom_call.1} parent=35 // pred_check_branch
          %421 = sbr.rel (%p419) target = $region48
        $region47: #{tpu_custom_call.1} parent=35 // pred_region
          %v422 = vld [vmem:[#allocation2] sm:$0xff]
          %v423 = vadd.f32 %v422, %v411
          %424 = vst [vmem:[#allocation2] sm:$0xff] %v423
          %s425 = scalar_lea.vmem [#allocation2], 8
          %v426 = vld [vmem:[%s425] sm:$0xff]
          %v427 = vadd.f32 %v426, %v412
          %428 = vst [vmem:[%s425] sm:$0xff] %v427
          %s429 = scalar_lea.vmem [#allocation2], 16
          %v430 = vld [vmem:[%s429] sm:$0xff]
          %v431 = vadd.f32 %v430, %v413
          %432 = vst [vmem:[%s429] sm:$0xff] %v431
          %s433 = scalar_lea.vmem [#allocation2], 24
          %v434 = vld [vmem:[%s433] sm:$0xff]
          %v435 = vadd.f32 %v434, %v414
          %436 = vst [vmem:[%s433] sm:$0xff] %v435
          %s437 = scalar_lea.vmem [#allocation2], 32
          %v438 = vld [vmem:[%s437] sm:$0xff]
          %v439 = vmul.f32 %v411, %v411
          %v440 = vadd.f32 %v438, %v439
          %441 = vst [vmem:[%s437] sm:$0xff] %v440
          %s442 = scalar_lea.vmem [#allocation2], 40
          %v443 = vld [vmem:[%s442] sm:$0xff]
          %v444 = vmul.f32 %v412, %v412
          %v445 = vadd.f32 %v443, %v444
          %446 = vst [vmem:[%s442] sm:$0xff] %v445
          %s447 = scalar_lea.vmem [#allocation2], 48
          %v448 = vld [vmem:[%s447] sm:$0xff]
          %v449 = vmul.f32 %v413, %v413
          %v450 = vadd.f32 %v448, %v449
          %451 = vst [vmem:[%s447] sm:$0xff] %v450
          %s452 = scalar_lea.vmem [#allocation2], 56
          %v453 = vld [vmem:[%s452] sm:$0xff]
          %v454 = vmul.f32 %v414, %v414
          %v455 = vadd.f32 %v453, %v454
          %456 = vst [vmem:[%s452] sm:$0xff] %v455
          %s457 = scalar_lea.vmem [#allocation2], 64
          %v458 = vld [vmem:[%s457] sm:$0xff]
          %v459 = vmul.f32 %v411, %v412
          %v460 = vadd.f32 %v458, %v459
          %461 = vst [vmem:[%s457] sm:$0xff] %v460
          %s462 = scalar_lea.vmem [#allocation2], 72
          %v463 = vld [vmem:[%s462] sm:$0xff]
          %v464 = vmul.f32 %v411, %v413
          %v465 = vadd.f32 %v463, %v464
          %466 = vst [vmem:[%s462] sm:$0xff] %v465
          %s467 = scalar_lea.vmem [#allocation2], 80
          %v468 = vld [vmem:[%s467] sm:$0xff]
          %v469 = vmul.f32 %v412, %v414
          %v470 = vadd.f32 %v468, %v469
          %471 = vst [vmem:[%s467] sm:$0xff] %v470
        $region48: #{tpu_custom_call.1} parent=35 // pred_fallthru
          _
        %p472 = scmp.gt.s32.totalorder %s417, 1
        // Predicated region
        $region49: #{tpu_custom_call.1} parent=35 // pred_check
          %p473 = pneg %p472
        $region50: #{tpu_custom_call.1} parent=35 // pred_check_branch
          %475 = sbr.rel (%p473) target = $region52
        $region51: #{tpu_custom_call.1} parent=35 // pred_region
          %v476 = vlaneseq
          %v477 = vshrl.u32 %v476, 7
          %v478 = vstv %s416
          %v479 = vadd.s32 %v477, %v478
          %vm480 = vcmp.lt.s32.totalorder %v479, 1
          %v481 = vsel %vm480, %v411, 0.0
          %v482 = vsel %vm480, %v412, 0.0
          %v483 = vsel %vm480, %v413, 0.0
          %v484 = vsel %vm480, %v414, 0.0
          %v485 = vld [vmem:[#allocation2] sm:$0xff]
          %v486 = vadd.f32 %v485, %v481
          %487 = vst [vmem:[#allocation2] sm:$0xff] %v486
          %s488 = scalar_lea.vmem [#allocation2], 8
          %v489 = vld [vmem:[%s488] sm:$0xff]
          %v490 = vadd.f32 %v489, %v482
          %491 = vst [vmem:[%s488] sm:$0xff] %v490
          %s492 = scalar_lea.vmem [#allocation2], 16
          %v493 = vld [vmem:[%s492] sm:$0xff]
          %v494 = vadd.f32 %v493, %v483
          %495 = vst [vmem:[%s492] sm:$0xff] %v494
          %s496 = scalar_lea.vmem [#allocation2], 24
          %v497 = vld [vmem:[%s496] sm:$0xff]
          %v498 = vadd.f32 %v497, %v484
          %499 = vst [vmem:[%s496] sm:$0xff] %v498
          %s500 = scalar_lea.vmem [#allocation2], 32
          %v501 = vld [vmem:[%s500] sm:$0xff]
          %v502 = vmul.f32 %v481, %v481
          %v503 = vadd.f32 %v501, %v502
          %504 = vst [vmem:[%s500] sm:$0xff] %v503
          %s505 = scalar_lea.vmem [#allocation2], 40
          %v506 = vld [vmem:[%s505] sm:$0xff]
          %v507 = vmul.f32 %v482, %v482
          %v508 = vadd.f32 %v506, %v507
          %509 = vst [vmem:[%s505] sm:$0xff] %v508
          %s510 = scalar_lea.vmem [#allocation2], 48
          %v511 = vld [vmem:[%s510] sm:$0xff]
          %v512 = vmul.f32 %v483, %v483
          %v513 = vadd.f32 %v511, %v512
          %514 = vst [vmem:[%s510] sm:$0xff] %v513
          %s515 = scalar_lea.vmem [#allocation2], 56
          %v516 = vld [vmem:[%s515] sm:$0xff]
          %v517 = vmul.f32 %v484, %v484
          %v518 = vadd.f32 %v516, %v517
          %519 = vst [vmem:[%s515] sm:$0xff] %v518
          %s520 = scalar_lea.vmem [#allocation2], 64
          %v521 = vld [vmem:[%s520] sm:$0xff]
          %v522 = vmul.f32 %v481, %v482
          %v523 = vadd.f32 %v521, %v522
          %524 = vst [vmem:[%s520] sm:$0xff] %v523
          %s525 = scalar_lea.vmem [#allocation2], 72
          %v526 = vld [vmem:[%s525] sm:$0xff]
          %v527 = vmul.f32 %v481, %v483
          %v528 = vadd.f32 %v526, %v527
          %529 = vst [vmem:[%s525] sm:$0xff] %v528
          %s530 = scalar_lea.vmem [#allocation2], 80
          %v531 = vld [vmem:[%s530] sm:$0xff]
          %v532 = vmul.f32 %v482, %v484
          %v533 = vadd.f32 %v531, %v532
          %534 = vst [vmem:[%s530] sm:$0xff] %v533
        $region52: #{tpu_custom_call.1} parent=35 // pred_fallthru
          _
        // Predicated region
        $region53: #{tpu_custom_call.1} parent=35 // pred_check
          %p535 = pneg %p396
        $region54: #{tpu_custom_call.1} parent=35 // pred_check_branch
          %537 = sbr.rel (%p535) target = $region56
        $region55: #{tpu_custom_call.1} parent=35 // pred_region
          %v538 = vld [vmem:[#allocation2] sm:$0xff]
          %v539 = vld [vmem:[#allocation2 + $0x8] sm:$0xff]
          %v540 = vld [vmem:[#allocation2 + $0x10] sm:$0xff]
          %v541 = vld [vmem:[#allocation2 + $0x18] sm:$0xff]
          %v542 = vld [vmem:[#allocation2 + $0x20] sm:$0xff]
          %v543 = vld [vmem:[#allocation2 + $0x28] sm:$0xff]
          %v544 = vld [vmem:[#allocation2 + $0x30] sm:$0xff]
          %v545 = vld [vmem:[#allocation2 + $0x38] sm:$0xff]
          %v546 = vld [vmem:[#allocation2 + $0x40] sm:$0xff]
          %v547 = vld [vmem:[#allocation2 + $0x48] sm:$0xff]
          %v548 = vld [vmem:[#allocation2 + $0x50] sm:$0xff]
          %549 = vst [vmem:[%s344] sm:$0xff] %v538
          %550 = vst [vmem:[%s344 + $0x8] sm:$0xff] %v539
          %551 = vst [vmem:[%s344 + $0x10] sm:$0xff] %v540
          %552 = vst [vmem:[%s344 + $0x18] sm:$0xff] %v541
          %553 = vst [vmem:[%s344 + $0x20] sm:$0xff] %v542
          %554 = vst [vmem:[%s344 + $0x28] sm:$0xff] %v543
          %555 = vst [vmem:[%s344 + $0x30] sm:$0xff] %v544
          %556 = vst [vmem:[%s344 + $0x38] sm:$0xff] %v545
          %557 = vst [vmem:[%s344 + $0x40] sm:$0xff] %v546
          %558 = vst [vmem:[%s344 + $0x48] sm:$0xff] %v547
          %559 = vst [vmem:[%s344 + $0x50] sm:$0xff] %v548
        $region56: #{tpu_custom_call.1} parent=35 // pred_fallthru
          _
        %s560 = sand.u32 %s169, 1
        %s561 = scalar_lea.sflag [#allocation5], %s560
        %s562 = sand.u32 %s169, 1
        %s563 = smul.addr %s562, 88
        %s564 = scalar_lea.vmem [#allocation6], %s563
        // Predicated region
        $region57: #{tpu_custom_call.1} parent=35 // pred_check
          %p565 = pneg %p179
        $region58: #{tpu_custom_call.1} parent=35 // pred_check_branch
          %567 = sbr.rel (%p565) target = $region60
        $region59: #{tpu_custom_call.1} parent=35 // pred_region
          %s569 = ssub.s32 1408, 1408
          %570 = vsyncadd %s561, %s569
          %s571 = smul.addr %s25, 11
          %s572 = smul.addr %s571, 128
          %s573 = scalar_lea.hbm %s4, %s572
          %s574 = sshll.u32 %s564, 4
          %s575 = int_to_ptr.vmem [resolvable:$true] %s574
          %580 = dma.vmem_to_hbm [thread:$0]  %s575, 1408, %s573, %s561, 128, 128, 8
        $region60: #{tpu_custom_call.1} parent=35 // pred_fallthru
          _
      $region36: #{tpu_custom_call.1} parent=5 // pred_fallthru
        _
      %p581 = scmp.le.s32.totalorder 2, %s16
      // Predicated region
      $region61: #{tpu_custom_call.1} parent=5 // pred_check
        %p582 = pneg %p581
      $region62: #{tpu_custom_call.1} parent=5 // pred_check_branch
        %584 = sbr.rel (%p582) target = $region64
      $region63: #{tpu_custom_call.1} parent=5 // pred_region
        %s585 = ssub.s32 %s16, 2
        // Predicated region
        $region65: #{tpu_custom_call.1} parent=63 // pred_check
          %p586 = pneg %p185
        $region66: #{tpu_custom_call.1} parent=63 // pred_check_branch
          %588 = sbr.rel (%p586) target = $region68
        $region67: #{tpu_custom_call.1} parent=63 // pred_region
          %s589 = sand.u32 %s170, 1
          %s590 = scalar_lea.sflag [#allocation5], %s589
          %s591 = sand.u32 %s170, 1
          %s592 = smul.addr %s591, 88
          %s593 = scalar_lea.vmem [#allocation6], %s592
          %594 = dma.done %s590, 1408
        $region68: #{tpu_custom_call.1} parent=63 // pred_fallthru
          _
      $region64: #{tpu_custom_call.1} parent=5 // pred_fallthru
        _
    $region6: #{tpu_custom_call.1} parent=1 // loop_footer
      %s20 = sadd.s32 1, %s16
    $region7: #{tpu_custom_call.1} parent=1 // loop_footer_branch
      %15 = sbr.rel target = $region3
    $region8: #{tpu_custom_call.1} parent=1 // loop_exit
      _
    %595 = vsyncpa [#allocation4], 1
    %s596 = scalar_lea.sflag [#allocation4], 1
    %597 = vsyncpa %s596, 1
    %598 = vsyncpa [#allocation5], 1
    %s599 = scalar_lea.sflag [#allocation5], 1
    %600 = vsyncpa %s599, 1

</llo_original>
